<compile_context>
chip_gen: v5e
topology: v5e:2x2
jax: 0.10.0
libtpu: 0.0.40
codegen_flags: <defaults>
</compile_context>

<pallas_src>
import functools

import jax
import jax.numpy as jnp
import numpy as np
from jax.experimental import pallas as pl
from jax.experimental.pallas import tpu as pltpu

LANE = 128      # lane width / padded class dimension
SUBLANE = 8     # sublane row multiple


def _round_up(n, m):
    return ((n + m - 1) // m) * m


# ---------------------------------------------------------------------------
# Fused Pallas kernel: stance head + rationale head, gridded over sentence tiles
# ---------------------------------------------------------------------------
def fused_heads_kernel(pooled_ref, sent_ref, w_pool_ref, rw1s_ref, b1_ref,
                       w2_ref, b2_ref, stance_ref, rat_ref, pc_ref, *, d, cdtype):
    """Both ClassificationHeads in one launch (dropout = eval identity).

    pooled_ref : [BP, D]   f32     padded pooled_output
    sent_ref   : [TS, D]   f32     current sentence-row tile
    w_pool_ref : [D, 3D]   cdtype  concat(stance.dense.W, rationale.dense.W[:D])
    rw1s_ref   : [D, 2D]   cdtype  rationale.dense.W[D:]
    b1_ref     : [1, 3D]   f32     concat(stance.dense.b, rationale.dense.b)
    w2_ref     : [3D, 128] cdtype  stacked lane-padded out_proj weights
    b2_ref     : [2, 128]  f32     lane-padded out_proj biases (row0 stance, row1 rationale)
    stance_ref : [BP, 128] f32     output (written once at grid step 0)
    rat_ref    : [TS, 128] f32     output tile
    pc_ref     : [1, 2D]   f32     scratch: pooled contribution + bias (persists over grid)
    """
    def mm(a, b):
        # Cast LHS activations to the weight storage dtype; accumulate in f32.
        return jnp.dot(a.astype(cdtype), b, preferred_element_type=jnp.float32)

    @pl.when(pl.program_id(0) == 0)
    def _():
        # Fused pooled-side first layer: [BP, D] @ [D, 3D]  (stance + rationale halves)
        pool_out = mm(pooled_ref[...], w_pool_ref[...])                 # [BP, 3D] f32
        # stance head: dense -> tanh -> out_proj   (activations stay f32; v5e-friendly)
        h_s = jnp.tanh(pool_out[:, :d] + b1_ref[0:1, :d])
        stance_ref[...] = mm(h_s, w2_ref[:d, :]) + b2_ref[0:1, :]
        # pooled contribution to the rationale hidden, rationale bias pre-added once
        pc_ref[...] = pool_out[0:1, d:] + b1_ref[0:1, d:]               # [1, 2D]

    # rationale head on cat([pooled_rep, sentence_reps], -1) without the concat:
    #   sentence_cat @ W1 == pooled @ W1[:D]  (broadcast)  +  sentence @ W1[D:]
    h_r = jnp.tanh(mm(sent_ref[...], rw1s_ref[...]) + pc_ref[...])
    rat_ref[...] = mm(h_r, w2_ref[d:, :]) + b2_ref[1:2, :]


# ---------------------------------------------------------------------------
# One-time parameter packing (layout + optional bf16 storage)
# ---------------------------------------------------------------------------
def pack_head_params(stance_params, rationale_params, compute_dtype=jnp.bfloat16):
    """Packs both heads' weights for the fused kernel.

    Returns (packed_dict, c_stance, c_rat). Do this once at init, not per call.
    """
    sw1, sb1, sw2, sb2 = stance_params
    rw1, rb1, rw2, rb2 = rationale_params
    D = sw1.shape[0]
    assert rw1.shape[0] == 2 * D
    c_stance, c_rat = sw2.shape[1], rw2.shape[1]
    assert c_stance <= LANE and c_rat <= LANE

    # First-layer weights: pooled-facing halves fused into one [D, 3D] matrix.
    w_pool = jnp.concatenate([sw1, rw1[:D]], axis=1).astype(compute_dtype)    # [D, 3D]
    rw1s = rw1[D:].astype(compute_dtype)                                      # [D, 2D]
    b1 = jnp.concatenate([sb1, rb1])[None].astype(jnp.float32)                # [1, 3D]

    # Second-layer weights: lane-pad to 128 (full-lane vst), stack stance over rationale.
    sw2p = jnp.zeros((D, LANE), jnp.float32).at[:, :c_stance].set(sw2)
    rw2p = jnp.zeros((2 * D, LANE), jnp.float32).at[:, :c_rat].set(rw2)
    w2 = jnp.concatenate([sw2p, rw2p], axis=0).astype(compute_dtype)          # [3D, 128]
    b2 = (jnp.zeros((2, LANE), jnp.float32)
          .at[0, :c_stance].set(sb2)
          .at[1, :c_rat].set(rb2))                                            # [2, 128]

    packed = dict(w_pool=w_pool, rw1s=rw1s, b1=b1, w2=w2, b2=b2)
    return packed, c_stance, c_rat


# ---------------------------------------------------------------------------
# Wrapper: padding / grid setup + pallas_call (jitted; shapes are static)
# ---------------------------------------------------------------------------
@functools.partial(jax.jit, static_argnames=("c_stance", "c_rat", "block_s"))
def run_heads(pooled_output, sentence_reps, packed, *, c_stance, c_rat, block_s=256):
    B, D = pooled_output.shape
    S = sentence_reps.shape[0]
    cdtype = packed["w_pool"].dtype
    csize = jnp.dtype(cdtype).itemsize

    BP = _round_up(max(B, 1), SUBLANE)
    TS = min(_round_up(block_s, SUBLANE), _round_up(S, SUBLANE))
    SP = _round_up(S, TS)
    grid = (SP // TS,)

    pooled_p = jnp.pad(pooled_output, ((0, BP - B), (0, 0)))
    sent_p = jnp.pad(sentence_reps, ((0, SP - S), (0, 0)))

    # VMEM budget from actual usage (x2 for buffering) + margin; capped for v7x (64 MiB).
    vmem = 2 * ((D * 3 * D + D * 2 * D + 3 * D * LANE) * csize
                + (3 * D + 2 * LANE) * 4
                + (BP + TS) * D * 4
                + (BP + TS) * LANE * 4) \
        + SUBLANE * 2 * D * 4 + (2 << 20)
    vmem = int(min(max(vmem, 8 << 20), 48 << 20))

    const = lambda i: (0, 0)
    grid_spec = pltpu.PrefetchScalarGridSpec(
        num_scalar_prefetch=0,
        grid=grid,
        in_specs=[
            pl.BlockSpec((BP, D), const),               # pooled_output (padded)
            pl.BlockSpec((TS, D), lambda i: (i, 0)),    # sentence-row tile
            pl.BlockSpec((D, 3 * D), const),            # w_pool   (VMEM-resident)
            pl.BlockSpec((D, 2 * D), const),            # rw1s     (VMEM-resident)
            pl.BlockSpec((1, 3 * D), const),            # b1
            pl.BlockSpec((3 * D, LANE), const),         # w2       (VMEM-resident)
            pl.BlockSpec((2, LANE), const),             # b2
        ],
        out_specs=(
            pl.BlockSpec((BP, LANE), const),            # stance logits (written at i==0)
            pl.BlockSpec((TS, LANE), lambda i: (i, 0)),  # rationale logit tile
        ),
        scratch_shapes=[pltpu.VMEM((1, 2 * D), jnp.float32)],
    )
    out_shape = (
        jax.ShapeDtypeStruct((BP, LANE), jnp.float32),
        jax.ShapeDtypeStruct((SP, LANE), jnp.float32),
    )

    # TODO(synk): for v7x megacore, split the pooled/stance path out of the grid
    # (or recompute it per tile) so this axis can be marked "parallel" and shard
    # sentence tiles across the 2 TensorCores.
    stance_lp, rat_lp = pl.pallas_call(
        functools.partial(fused_heads_kernel, d=D, cdtype=cdtype),
        grid_spec=grid_spec,
        out_shape=out_shape,
        compiler_params=pltpu.CompilerParams(
            dimension_semantics=("arbitrary",),
            vmem_limit_bytes=vmem),
    )(pooled_p, sent_p, packed["w_pool"], packed["rw1s"], packed["b1"],
      packed["w2"], packed["b2"])

    stance_logits = stance_lp[:B, :c_stance]
    rationale_logits = rat_lp[:S, :c_rat]
    stance_pred = jnp.argmax(stance_logits, axis=-1).astype(jnp.int32)
    rationale_pred = jnp.argmax(rationale_logits, axis=-1).astype(jnp.int32)
    return stance_logits, rationale_logits, stance_pred, rationale_pred


# ---------------------------------------------------------------------------
# Parameter construction (deterministic, synthetic; torch Linear [in, out] layout)
# ---------------------------------------------------------------------------
def make_head_params(key, in_dim, num_labels):
    k1, k2, k3, k4 = jax.random.split(key, 4)
    s = 1.0 / np.sqrt(in_dim)
    w1 = jax.random.uniform(k1, (in_dim, in_dim), jnp.float32, -s, s)
    b1 = jax.random.uniform(k2, (in_dim,), jnp.float32, -s, s)
    w2 = jax.random.uniform(k3, (in_dim, num_labels), jnp.float32, -s, s)
    b2 = jax.random.uniform(k4, (num_labels,), jnp.float32, -s, s)
    return (w1, b1, w2, b2)


# ---------------------------------------------------------------------------
# OnePassParagraphClassifier.forward (inference path, no labels)
# ---------------------------------------------------------------------------
def one_pass_forward(bert_out, pooled_output, sent_indices, packed, c_stance, c_rat,
                     rationale_score=False):
    # TODO(synk): sentence row gather stays in XLA; for large S move it in-kernel
    # via scalar-prefetched sent_indices + manual row DMA from bert_out in HBM.
    sentence_reps = jnp.take(bert_out[0], sent_indices[0], axis=0)        # [S, D]
    S = sentence_reps.shape[0]

    stance_logits, rationale_logits, stance_pred, rat_pred = run_heads(
        pooled_output, sentence_reps, packed, c_stance=c_stance, c_rat=c_rat)

    # TODO(synk): CrossEntropyLoss branches skipped — labels are None on this path.
    stance_loss = None
    rationale_loss = None

    if rationale_score:
        rationale_pred = rationale_logits[:, 1][None]                     # [1, S] scores
    else:
        rationale_pred = rat_pred[None]                                   # [1, S] int32

    # Module hard-codes an all-ones sentence mask (faithful to the PyTorch code).
    sentence_mask = jnp.ones_like(sent_indices)

    # Single host sync for every returned value (no per-output np.asarray round trips).
    stance_host, rat_host, mask_host = jax.device_get(
        (stance_pred, rationale_pred, sentence_mask))
    rationale_out = [rp[m.astype(bool)].tolist()
                     for rp, m in zip(rat_host, mask_host)]
    stance_out = stance_host.tolist()
    assert len(rationale_out[0]) == S
    return rationale_out, stance_out, rationale_loss, stance_loss


# ---------------------------------------------------------------------------
# Pure-JAX reference for the heads (correctness check)
# ---------------------------------------------------------------------------
def cls_head_ref(x, w1, b1, w2, b2):
    h = jnp.tanh(x @ w1 + b1)
    return h @ w2 + b2


if __name__ == "__main__":
    key = jax.random.PRNGKey(0)
    k_bert, k_pool, k_stance, k_rat, k_idx = jax.random.split(key, 5)

    # Small, module-consistent shapes
    B = 1          # paragraph batch (module indexes bert_out[0] -> B == 1)
    L = 16         # sequence length
    D = 128        # bert_dim
    S = 8          # number of sentences (len(sent_indices[0]))

    bert_out = jax.random.normal(k_bert, (B, L, D), jnp.float32)
    pooled_output = jax.random.normal(k_pool, (B, D), jnp.float32)
    sent_indices = jax.random.randint(k_idx, (1, S), 0, L, dtype=jnp.int32)

    # ClassificationHead(bert_dim, 3)  and  ClassificationHead(2*bert_dim, 2)
    stance_params = make_head_params(k_stance, D, 3)
    rationale_params = make_head_params(k_rat, 2 * D, 2)

    # Pack (and optionally bf16-cast) head weights ONCE, outside the per-call path.
    packed_f32, c_stance, c_rat = pack_head_params(
        stance_params, rationale_params, compute_dtype=jnp.float32)
    packed_bf16, _, _ = pack_head_params(
        stance_params, rationale_params, compute_dtype=jnp.bfloat16)

    # Full forward (inference path).
    rationale_out, stance_out, rationale_loss, stance_loss = one_pass_forward(
        bert_out, pooled_output, sent_indices, packed_f32, c_stance, c_rat,
        rationale_score=False)

    # Pure-JAX reference for both heads.
    sentence_reps = jnp.take(bert_out[0], sent_indices[0], axis=0)
    stance_ref = cls_head_ref(pooled_output, *stance_params)
    sentence_cat = jnp.concatenate(
        [jnp.tile(pooled_output, (S, 1)), sentence_reps], axis=1)
    rat_ref = cls_head_ref(sentence_cat, *rationale_params)

    # --- f32-weight path: tight check on logits and argmax ---
    s_log, r_log, s_pred, r_pred = run_heads(
        pooled_output, sentence_reps, packed_f32, c_stance=c_stance, c_rat=c_rat)
    jax.block_until_ready((s_log, r_log, s_pred, r_pred))
    np.testing.assert_allclose(np.asarray(s_log), np.asarray(stance_ref),
                               rtol=1e-5, atol=1e-5)
    np.testing.assert_allclose(np.asarray(r_log), np.asarray(rat_ref),
                               rtol=1e-5, atol=1e-5)
    np.testing.assert_array_equal(np.asarray(s_pred),
                                  np.argmax(np.asarray(stance_ref), axis=-1))
    np.testing.assert_array_equal(np.asarray(r_pred),
                                  np.argmax(np.asarray(rat_ref), axis=-1))

    # --- bf16-weight path (halved HBM weight traffic): loose check on logits ---
    s_log16, r_log16, _, _ = run_heads(
        pooled_output, sentence_reps, packed_bf16, c_stance=c_stance, c_rat=c_rat)
    jax.block_until_ready((s_log16, r_log16))
    np.testing.assert_allclose(np.asarray(s_log16), np.asarray(stance_ref),
                               rtol=5e-2, atol=5e-2)
    np.testing.assert_allclose(np.asarray(r_log16), np.asarray(rat_ref),
                               rtol=5e-2, atol=5e-2)

    assert len(stance_out) == B
    assert len(rationale_out) == 1 and len(rationale_out[0]) == S
    assert rationale_loss is None and stance_loss is None

    print("KERNEL_OK")
</pallas_src>

<mosaic_0001>
module attributes {stable_mosaic.version = 11 : i64} {
  func.func @fused_heads_kernel(%arg0: i32, %arg1: memref<8x128xf32, #tpu.memory_space<vmem>>, %arg2: memref<8x128xf32, #tpu.memory_space<vmem>>, %arg3: memref<128x384xf32, #tpu.memory_space<vmem>>, %arg4: memref<128x256xf32, #tpu.memory_space<vmem>>, %arg5: memref<1x384xf32, #tpu.memory_space<vmem>>, %arg6: memref<384x128xf32, #tpu.memory_space<vmem>>, %arg7: memref<2x128xf32, #tpu.memory_space<vmem>>, %arg8: memref<8x128xf32, #tpu.memory_space<vmem>>, %arg9: memref<8x128xf32, #tpu.memory_space<vmem>>, %arg10: memref<1x256xf32, #tpu.memory_space<vmem>>) attributes {dimension_semantics = [#tpu.dimension_semantics<arbitrary>], iteration_bounds = array<i64: 1>, scalar_prefetch = 0 : i64, scratch_operands = 1 : i64, tpu.core_type = #tpu.core_type<tc>, window_params = [{pipeline_mode = #tpu.pipeline_mode<synchronous>, transform_indices = @transform_0, window_bounds = array<i64: 8, 128>}, {transform_indices = @transform_1, window_bounds = array<i64: 8, 128>}, {pipeline_mode = #tpu.pipeline_mode<synchronous>, transform_indices = @transform_2, window_bounds = array<i64: 128, 384>}, {pipeline_mode = #tpu.pipeline_mode<synchronous>, transform_indices = @transform_3, window_bounds = array<i64: 128, 256>}, {pipeline_mode = #tpu.pipeline_mode<synchronous>, transform_indices = @transform_4, window_bounds = array<i64: 1, 384>}, {pipeline_mode = #tpu.pipeline_mode<synchronous>, transform_indices = @transform_5, window_bounds = array<i64: 384, 128>}, {pipeline_mode = #tpu.pipeline_mode<synchronous>, transform_indices = @transform_6, window_bounds = array<i64: 2, 128>}, {pipeline_mode = #tpu.pipeline_mode<synchronous>, transform_indices = @transform_7, window_bounds = array<i64: 8, 128>}, {transform_indices = @transform_8, window_bounds = array<i64: 8, 128>}]} {
    %c0_i32 = arith.constant 0 : i32
    %0 = arith.cmpi eq, %arg0, %c0_i32 : i32
    %1 = arith.extui %0 : i1 to i32
    %c0_i32_0 = arith.constant 0 : i32
    %2 = arith.cmpi ne, %1, %c0_i32_0 : i32
    scf.if %2 {
      %c0_11 = arith.constant 0 : index
      %c0_12 = arith.constant 0 : index
      %16 = vector.load %arg1[%c0_11, %c0_12] : memref<8x128xf32, #tpu.memory_space<vmem>>, vector<8x128xf32>
      %c0_13 = arith.constant 0 : index
      %c0_14 = arith.constant 0 : index
      %17 = vector.load %arg3[%c0_13, %c0_14] : memref<128x384xf32, #tpu.memory_space<vmem>>, vector<128x384xf32>
      %cst_15 = arith.constant dense<0.000000e+00> : vector<8x384xf32>
      %18 = tpu.matmul %16, %17, %cst_15 {dimension_numbers = #tpu.dot_dimension_numbers<[1], [0], [0], [1], [0, 0, 1, 1], [], []>} : vector<8x128xf32>, vector<128x384xf32>, vector<8x384xf32> -> vector<8x384xf32>
      %19 = vector.extract_strided_slice %18 {offsets = [0, 0], sizes = [8, 128], strides = [1, 1]} : vector<8x384xf32> to vector<8x128xf32>
      %c0_16 = arith.constant 0 : index
      %c0_17 = arith.constant 0 : index
      %20 = vector.load %arg5[%c0_16, %c0_17] : memref<1x384xf32, #tpu.memory_space<vmem>>, vector<1x128xf32>
      %21 = vector.broadcast %20 : vector<1x128xf32> to vector<8x128xf32>
      %22 = arith.addf %19, %21 : vector<8x128xf32>
      %23 = math.tanh %22 : vector<8x128xf32>
      %c0_18 = arith.constant 0 : index
      %c0_19 = arith.constant 0 : index
      %24 = vector.load %arg6[%c0_18, %c0_19] : memref<384x128xf32, #tpu.memory_space<vmem>>, vector<128x128xf32>
      %cst_20 = arith.constant dense<0.000000e+00> : vector<8x128xf32>
      %25 = tpu.matmul %23, %24, %cst_20 {dimension_numbers = #tpu.dot_dimension_numbers<[1], [0], [0], [1], [0, 0, 1, 1], [], []>} : vector<8x128xf32>, vector<128x128xf32>, vector<8x128xf32> -> vector<8x128xf32>
      %c0_21 = arith.constant 0 : index
      %c0_22 = arith.constant 0 : index
      %26 = vector.load %arg7[%c0_21, %c0_22] : memref<2x128xf32, #tpu.memory_space<vmem>>, vector<1x128xf32>
      %27 = vector.broadcast %26 : vector<1x128xf32> to vector<8x128xf32>
      %28 = arith.addf %25, %27 : vector<8x128xf32>
      %c0_23 = arith.constant 0 : index
      %c0_24 = arith.constant 0 : index
      %29 = vector.load %arg8[%c0_23, %c0_24] : memref<8x128xf32, #tpu.memory_space<vmem>>, vector<8x128xf32>
      tpu.vector_store %arg8[%c0_23, %c0_24], %28 {strides = array<i32>} : memref<8x128xf32, #tpu.memory_space<vmem>>, vector<8x128xf32>,
      %30 = vector.extract_strided_slice %18 {offsets = [0, 128], sizes = [1, 256], strides = [1, 1]} : vector<8x384xf32> to vector<1x256xf32>
      %c0_25 = arith.constant 0 : index
      %c128_26 = arith.constant 128 : index
      %31 = vector.load %arg5[%c0_25, %c128_26] : memref<1x384xf32, #tpu.memory_space<vmem>>, vector<1x256xf32>
      %32 = arith.addf %30, %31 : vector<1x256xf32>
      %c0_27 = arith.constant 0 : index
      %c0_28 = arith.constant 0 : index
      %33 = vector.load %arg10[%c0_27, %c0_28] : memref<1x256xf32, #tpu.memory_space<vmem>>, vector<1x256xf32>
      tpu.vector_store %arg10[%c0_27, %c0_28], %32 {strides = array<i32>} : memref<1x256xf32, #tpu.memory_space<vmem>>, vector<1x256xf32>,
    } else {
    }
    %c0 = arith.constant 0 : index
    %c0_1 = arith.constant 0 : index
    %3 = vector.load %arg2[%c0, %c0_1] : memref<8x128xf32, #tpu.memory_space<vmem>>, vector<8x128xf32>
    %c0_2 = arith.constant 0 : index
    %c0_3 = arith.constant 0 : index
    %4 = vector.load %arg4[%c0_2, %c0_3] : memref<128x256xf32, #tpu.memory_space<vmem>>, vector<128x256xf32>
    %cst = arith.constant dense<0.000000e+00> : vector<8x256xf32>
    %5 = tpu.matmul %3, %4, %cst {dimension_numbers = #tpu.dot_dimension_numbers<[1], [0], [0], [1], [0, 0, 1, 1], [], []>} : vector<8x128xf32>, vector<128x256xf32>, vector<8x256xf32> -> vector<8x256xf32>
    %c0_4 = arith.constant 0 : index
    %c0_5 = arith.constant 0 : index
    %6 = vector.load %arg10[%c0_4, %c0_5] : memref<1x256xf32, #tpu.memory_space<vmem>>, vector<1x256xf32>
    %7 = vector.broadcast %6 : vector<1x256xf32> to vector<8x256xf32>
    %8 = arith.addf %5, %7 : vector<8x256xf32>
    %9 = math.tanh %8 : vector<8x256xf32>
    %c128 = arith.constant 128 : index
    %c0_6 = arith.constant 0 : index
    %10 = vector.load %arg6[%c128, %c0_6] : memref<384x128xf32, #tpu.memory_space<vmem>>, vector<256x128xf32>
    %cst_7 = arith.constant dense<0.000000e+00> : vector<8x128xf32>
    %11 = tpu.matmul %9, %10, %cst_7 {dimension_numbers = #tpu.dot_dimension_numbers<[1], [0], [0], [1], [0, 0, 1, 1], [], []>} : vector<8x256xf32>, vector<256x128xf32>, vector<8x128xf32> -> vector<8x128xf32>
    %c1 = arith.constant 1 : index
    %c0_8 = arith.constant 0 : index
    %12 = vector.load %arg7[%c1, %c0_8] : memref<2x128xf32, #tpu.memory_space<vmem>>, vector<1x128xf32>
    %13 = vector.broadcast %12 : vector<1x128xf32> to vector<8x128xf32>
    %14 = arith.addf %11, %13 : vector<8x128xf32>
    %c0_9 = arith.constant 0 : index
    %c0_10 = arith.constant 0 : index
    %15 = vector.load %arg9[%c0_9, %c0_10] : memref<8x128xf32, #tpu.memory_space<vmem>>, vector<8x128xf32>
    tpu.vector_store %arg9[%c0_9, %c0_10], %14 {strides = array<i32>} : memref<8x128xf32, #tpu.memory_space<vmem>>, vector<8x128xf32>,
    return
  }
  func.func @transform_0(%arg0: i32) -> (i32, i32) {
    %c0_i32 = arith.constant 0 : i32
    %c0_i32_0 = arith.constant 0 : i32
    %c0_i32_1 = arith.constant 0 : i32
    return %c0_i32, %c0_i32_0 : i32, i32
  }
  func.func @transform_1(%arg0: i32) -> (i32, i32) {
    %c0_i32 = arith.constant 0 : i32
    %c0_i32_0 = arith.constant 0 : i32
    return %arg0, %c0_i32 : i32, i32
  }
  func.func @transform_2(%arg0: i32) -> (i32, i32) {
    %c0_i32 = arith.constant 0 : i32
    %c0_i32_0 = arith.constant 0 : i32
    %c0_i32_1 = arith.constant 0 : i32
    return %c0_i32, %c0_i32_0 : i32, i32
  }
  func.func @transform_3(%arg0: i32) -> (i32, i32) {
    %c0_i32 = arith.constant 0 : i32
    %c0_i32_0 = arith.constant 0 : i32
    %c0_i32_1 = arith.constant 0 : i32
    return %c0_i32, %c0_i32_0 : i32, i32
  }
  func.func @transform_4(%arg0: i32) -> (i32, i32) {
    %c0_i32 = arith.constant 0 : i32
    %c0_i32_0 = arith.constant 0 : i32
    %c0_i32_1 = arith.constant 0 : i32
    return %c0_i32, %c0_i32_0 : i32, i32
  }
  func.func @transform_5(%arg0: i32) -> (i32, i32) {
    %c0_i32 = arith.constant 0 : i32
    %c0_i32_0 = arith.constant 0 : i32
    %c0_i32_1 = arith.constant 0 : i32
    return %c0_i32, %c0_i32_0 : i32, i32
  }
  func.func @transform_6(%arg0: i32) -> (i32, i32) {
    %c0_i32 = arith.constant 0 : i32
    %c0_i32_0 = arith.constant 0 : i32
    %c0_i32_1 = arith.constant 0 : i32
    return %c0_i32, %c0_i32_0 : i32, i32
  }
  func.func @transform_7(%arg0: i32) -> (i32, i32) {
    %c0_i32 = arith.constant 0 : i32
    %c0_i32_0 = arith.constant 0 : i32
    %c0_i32_1 = arith.constant 0 : i32
    return %c0_i32, %c0_i32_0 : i32, i32
  }
  func.func @transform_8(%arg0: i32) -> (i32, i32) {
    %c0_i32 = arith.constant 0 : i32
    %c0_i32_0 = arith.constant 0 : i32
    return %arg0, %c0_i32 : i32, i32
  }
}

</mosaic_0001>

<llo_original>
// kernel: run_heads.1
$region0: #{run_heads.1}
  #allocation0 [shape = 'u32[]', space=smem, size = 0x4, offset = 0x4, fixed_abs, tag = 'smem constant byte address 0x4 - core index']
  #allocation1 [shape = 'u32[72,128]{1,0:T(1,128)}', space=vmem, size = 0x9000, scoped, tag = 'internal scratch']
  #allocation2 [shape = 'f32[1,256]{1,0:T(1,128)}', space=vmem, size = 0x400, scoped, tag = 'scratch operand']
  %s0 = inlined_call_operand.vmem [shape: f32[8,128], index: 0, kind: input, shape index: {}]
  %s1 = inlined_call_operand.vmem [shape: f32[8,128], index: 1, kind: input, shape index: {}]
  %s2 = inlined_call_operand.hbm [shape: f32[128,384], index: 2, kind: input, shape index: {}]
  %s3 = inlined_call_operand.hbm [shape: f32[128,256], index: 3, kind: input, shape index: {}]
  %s4 = inlined_call_operand.vmem [shape: f32[1,384], index: 4, kind: input, shape index: {}]
  %s5 = inlined_call_operand.hbm [shape: f32[384,128], index: 5, kind: input, shape index: {}]
  %s6 = inlined_call_operand.hbm [shape: f32[2,128], index: 6, kind: input, shape index: {}]
  %s7 = inlined_call_operand.vmem [shape: f32[8,128], index: 7, kind: output, shape index: {0}]
  %s8 = inlined_call_operand.vmem [shape: f32[8,128], index: 8, kind: output, shape index: {1}]
  %9 = xla_tuple %s7, %s8
  %s10 = sld [smem:[#allocation0]]
  $region66: #{run_heads.1} parent=0
    _
  %s12 = ssub.s32 1, %s10
  %s13 = scalar_select 0, %s12, %s10
  $region1: #{run_heads.1} parent=0
    #allocation3 [shape = 'u8[196608]{0}', space=vmem, size = 0x30000, scoped, tag = 'input window, operand 2, single buffered']
    #allocation4 [shape = 's32[1]{0}', space=sflag, size = 0x4, scoped, tag = 'scoped memory for run_heads.1']
    #allocation5 [shape = 'u8[131072]{0}', space=vmem, size = 0x20000, scoped, tag = 'input window, operand 3, single buffered']
    #allocation6 [shape = 's32[1]{0}', space=sflag, size = 0x4, scoped, tag = 'scoped memory for run_heads.1']
    #allocation7 [shape = 'u8[196608]{0}', space=vmem, size = 0x30000, scoped, tag = 'input window, operand 5, single buffered']
    #allocation8 [shape = 'u8[1024]{0}', space=vmem, size = 0x400, scoped, tag = 'input window, operand 6, single buffered']
    #allocation9 [shape = 's32[1]{0}', space=sflag, size = 0x4, scoped, tag = 'scoped memory for run_heads.1']
    %14 = vsyncpa [#allocation4], 0
    %15 = vsyncpa [#allocation6], 0
    %16 = vsyncpa [#allocation9], 0
    // Predicated region
    $region2: #{run_heads.1} parent=1 // pred_check
      _
    $region3: #{run_heads.1} parent=1 // pred_check_branch
      %18 = sbr.rel (0) target = $region5
    $region4: #{run_heads.1} parent=1 // pred_region
      _
    $region5: #{run_heads.1} parent=1 // pred_fallthru
      _
    // Predicated region
    $region6: #{run_heads.1} parent=1 // pred_check
      _
    $region7: #{run_heads.1} parent=1 // pred_check_branch
      %20 = sbr.rel (0) target = $region9
    $region8: #{run_heads.1} parent=1 // pred_region
      _
    $region9: #{run_heads.1} parent=1 // pred_fallthru
      _
    // Predicated region
    $region10: #{run_heads.1} parent=1 // pred_check
      _
    $region11: #{run_heads.1} parent=1 // pred_check_branch
      %22 = sbr.rel (0) target = $region13
    $region12: #{run_heads.1} parent=1 // pred_region
      %24 = vsyncadd [#allocation4], 0
      %s25 = sshll.u32 %s2, 4
      %s26 = int_to_ptr.hbm [resolvable:$true] %s25
      %s27 = sshll.u32 [#allocation3], 4
      %s28 = int_to_ptr.vmem [resolvable:$true] %s27
      %33 = dma.hbm_to_vmem [thread:$0]  %s26, 6144, %s28, [#allocation4], 384, 384, 24
    $region13: #{run_heads.1} parent=1 // pred_fallthru
      _
    // Predicated region
    $region14: #{run_heads.1} parent=1 // pred_check
      _
    $region15: #{run_heads.1} parent=1 // pred_check_branch
      %35 = sbr.rel (0) target = $region17
    $region16: #{run_heads.1} parent=1 // pred_region
      %37 = vsyncadd [#allocation6], 0
      %s38 = sshll.u32 %s3, 4
      %s39 = int_to_ptr.hbm [resolvable:$true] %s38
      %s40 = sshll.u32 [#allocation5], 4
      %s41 = int_to_ptr.vmem [resolvable:$true] %s40
      %46 = dma.hbm_to_vmem [thread:$0]  %s39, 4096, %s41, [#allocation6], 256, 256, 16
    $region17: #{run_heads.1} parent=1 // pred_fallthru
      _
    // Predicated region
    $region18: #{run_heads.1} parent=1 // pred_check
      _
    $region19: #{run_heads.1} parent=1 // pred_check_branch
      %48 = sbr.rel (0) target = $region21
    $region20: #{run_heads.1} parent=1 // pred_region
      _
    $region21: #{run_heads.1} parent=1 // pred_fallthru
      _
    // Predicated region
    $region22: #{run_heads.1} parent=1 // pred_check
      _
    $region23: #{run_heads.1} parent=1 // pred_check_branch
      %50 = sbr.rel (0) target = $region25
    $region24: #{run_heads.1} parent=1 // pred_region
      %52 = vsyncadd [#allocation6], 0
      %s53 = sshll.u32 %s5, 4
      %s54 = int_to_ptr.hbm [resolvable:$true] %s53
      %s55 = sshll.u32 [#allocation7], 4
      %s56 = int_to_ptr.vmem [resolvable:$true] %s55
      %61 = dma.hbm_to_vmem [thread:$0]  %s54, 6144, %s56, [#allocation6], 128, 128, 8
    $region25: #{run_heads.1} parent=1 // pred_fallthru
      _
    // Predicated region
    $region26: #{run_heads.1} parent=1 // pred_check
      _
    $region27: #{run_heads.1} parent=1 // pred_check_branch
      %63 = sbr.rel (0) target = $region29
    $region28: #{run_heads.1} parent=1 // pred_region
      %65 = vsyncadd [#allocation9], 0
      %s67 = sshll.u32 %s6, 4
      %s68 = int_to_ptr.hbm [resolvable:$true] %s67
      %s69 = sshll.u32 [#allocation8], 4
      %s70 = int_to_ptr.vmem [resolvable:$true] %s69
      %72 = dma.hbm_to_vmem [thread:$0]  %s68, 32, %s70, [#allocation9]
    $region29: #{run_heads.1} parent=1 // pred_fallthru
      _
    // Predicated region
    $region30: #{run_heads.1} parent=1 // pred_check
      _
    $region31: #{run_heads.1} parent=1 // pred_check_branch
      %74 = sbr.rel (0) target = $region33
    $region32: #{run_heads.1} parent=1 // pred_region
      %76 = dma.done [#allocation4], 6144
    $region33: #{run_heads.1} parent=1 // pred_fallthru
      _
    // Predicated region
    $region34: #{run_heads.1} parent=1 // pred_check
      _
    $region35: #{run_heads.1} parent=1 // pred_check_branch
      %78 = sbr.rel (0) target = $region37
    $region36: #{run_heads.1} parent=1 // pred_region
      %80 = dma.done [#allocation6], 4096
    $region37: #{run_heads.1} parent=1 // pred_fallthru
      _
    // Predicated region
    $region38: #{run_heads.1} parent=1 // pred_check
      _
    $region39: #{run_heads.1} parent=1 // pred_check_branch
      %82 = sbr.rel (0) target = $region41
    $region40: #{run_heads.1} parent=1 // pred_region
      %84 = dma.done [#allocation6], 6144
    $region41: #{run_heads.1} parent=1 // pred_fallthru
      _
    // Predicated region
    $region42: #{run_heads.1} parent=1 // pred_check
      _
    $region43: #{run_heads.1} parent=1 // pred_check_branch
      %86 = sbr.rel (0) target = $region45
    $region44: #{run_heads.1} parent=1 // pred_region
      %88 = dma.done [#allocation9], 32
    $region45: #{run_heads.1} parent=1 // pred_fallthru
      _
    %p89 = scmp.eq.s32.totalorder 0, 0
    // Predicated region
    $region46: #{run_heads.1} parent=1 // pred_check
      %p90 = pneg %p89
    $region47: #{run_heads.1} parent=1 // pred_check_branch
      %92 = sbr.rel (%p90) target = $region49
    $region48: #{run_heads.1} parent=1 // pred_region
      %v93 = vld [vmem:[%s0] sm:$0xff]
      %v94 = vld [vmem:[#allocation3] sm:$0xff]
      %v95 = vld [vmem:[#allocation3 + $0x8] sm:$0xff]
      %v96 = vld [vmem:[#allocation3 + $0x10] sm:$0xff]
      %v97 = vld [vmem:[#allocation3 + $0x18] sm:$0xff]
      %v98 = vld [vmem:[#allocation3 + $0x20] sm:$0xff]
      %v99 = vld [vmem:[#allocation3 + $0x28] sm:$0xff]
      %v100 = vld [vmem:[#allocation3 + $0x30] sm:$0xff]
      %v101 = vld [vmem:[#allocation3 + $0x38] sm:$0xff]
      %v102 = vld [vmem:[#allocation3 + $0x40] sm:$0xff]
      %v103 = vld [vmem:[#allocation3 + $0x48] sm:$0xff]
      %v104 = vld [vmem:[#allocation3 + $0x50] sm:$0xff]
      %v105 = vld [vmem:[#allocation3 + $0x58] sm:$0xff]
      %v106 = vld [vmem:[#allocation3 + $0x60] sm:$0xff]
      %v107 = vld [vmem:[#allocation3 + $0x68] sm:$0xff]
      %v108 = vld [vmem:[#allocation3 + $0x70] sm:$0xff]
      %v109 = vld [vmem:[#allocation3 + $0x78] sm:$0xff]
      %v110 = vld [vmem:[#allocation3 + $0x80] sm:$0xff]
      %v111 = vld [vmem:[#allocation3 + $0x88] sm:$0xff]
      %v112 = vld [vmem:[#allocation3 + $0x90] sm:$0xff]
      %v113 = vld [vmem:[#allocation3 + $0x98] sm:$0xff]
      %v114 = vld [vmem:[#allocation3 + $0xa0] sm:$0xff]
      %v115 = vld [vmem:[#allocation3 + $0xa8] sm:$0xff]
      %v116 = vld [vmem:[#allocation3 + $0xb0] sm:$0xff]
      %v117 = vld [vmem:[#allocation3 + $0xb8] sm:$0xff]
      %v118 = vld [vmem:[#allocation3 + $0xc0] sm:$0xff]
      %v119 = vld [vmem:[#allocation3 + $0xc8] sm:$0xff]
      %v120 = vld [vmem:[#allocation3 + $0xd0] sm:$0xff]
      %v121 = vld [vmem:[#allocation3 + $0xd8] sm:$0xff]
      %v122 = vld [vmem:[#allocation3 + $0xe0] sm:$0xff]
      %v123 = vld [vmem:[#allocation3 + $0xe8] sm:$0xff]
      %v124 = vld [vmem:[#allocation3 + $0xf0] sm:$0xff]
      %v125 = vld [vmem:[#allocation3 + $0xf8] sm:$0xff]
      %v126 = vld [vmem:[#allocation3 + $0x100] sm:$0xff]
      %v127 = vld [vmem:[#allocation3 + $0x108] sm:$0xff]
      %v128 = vld [vmem:[#allocation3 + $0x110] sm:$0xff]
      %v129 = vld [vmem:[#allocation3 + $0x118] sm:$0xff]
      %v130 = vld [vmem:[#allocation3 + $0x120] sm:$0xff]
      %v131 = vld [vmem:[#allocation3 + $0x128] sm:$0xff]
      %v132 = vld [vmem:[#allocation3 + $0x130] sm:$0xff]
      %v133 = vld [vmem:[#allocation3 + $0x138] sm:$0xff]
      %v134 = vld [vmem:[#allocation3 + $0x140] sm:$0xff]
      %v135 = vld [vmem:[#allocation3 + $0x148] sm:$0xff]
      %v136 = vld [vmem:[#allocation3 + $0x150] sm:$0xff]
      %v137 = vld [vmem:[#allocation3 + $0x158] sm:$0xff]
      %v138 = vld [vmem:[#allocation3 + $0x160] sm:$0xff]
      %v139 = vld [vmem:[#allocation3 + $0x168] sm:$0xff]
      %v140 = vld [vmem:[#allocation3 + $0x170] sm:$0xff]
      %v141 = vld [vmem:[#allocation3 + $0x178] sm:$0xff]
      %142 = vmatpush.msra.mxu0 %v139
      %143 = vmatpush.msra.mxu0 %v136
      %144 = vmatpush.msra.mxu0 %v133
      %145 = vmatpush.msra.mxu0 %v130
      %146 = vmatpush.msra.mxu0 %v127
      %147 = vmatpush.msra.mxu0 %v124
      %148 = vmatpush.msra.mxu0 %v121
      %149 = vmatpush.msra.mxu0 %v118
      %150 = vmatpush.msra.mxu0 %v115
      %151 = vmatpush.msra.mxu0 %v112
      %152 = vmatpush.msra.mxu0 %v109
      %153 = vmatpush.msra.mxu0 %v106
      %154 = vmatpush.msra.mxu0 %v103
      %155 = vmatpush.msra.mxu0 %v100
      %156 = vmatpush.msra.mxu0 %v97
      %157 = vmatpush.msra.mxu0 %v94
      %158 = vmatmul.f32.gmra.mxu0 %v93
      %v159 = vpop.f32.mrf.mxu0
      %v160 = vadd.f32 0.0, %v159
      %161 = vdwg.mxu0
      %162 = vmatpush.msra.mxu0 %v140
      %163 = vmatpush.msra.mxu0 %v137
      %164 = vmatpush.msra.mxu0 %v134
      %165 = vmatpush.msra.mxu0 %v131
      %166 = vmatpush.msra.mxu0 %v128
      %167 = vmatpush.msra.mxu0 %v125
      %168 = vmatpush.msra.mxu0 %v122
      %169 = vmatpush.msra.mxu0 %v119
      %170 = vmatpush.msra.mxu0 %v116
      %171 = vmatpush.msra.mxu0 %v113
      %172 = vmatpush.msra.mxu0 %v110
      %173 = vmatpush.msra.mxu0 %v107
      %174 = vmatpush.msra.mxu0 %v104
      %175 = vmatpush.msra.mxu0 %v101
      %176 = vmatpush.msra.mxu0 %v98
      %177 = vmatpush.msra.mxu0 %v95
      %178 = vmatmul.f32.gmra.mxu0 %v93
      %v179 = vpop.f32.mrf.mxu0
      %v180 = vadd.f32 0.0, %v179
      %181 = vdwg.mxu0
      %182 = vmatpush.msra.mxu0 %v141
      %183 = vmatpush.msra.mxu0 %v138
      %184 = vmatpush.msra.mxu0 %v135
      %185 = vmatpush.msra.mxu0 %v132
      %186 = vmatpush.msra.mxu0 %v129
      %187 = vmatpush.msra.mxu0 %v126
      %188 = vmatpush.msra.mxu0 %v123
      %189 = vmatpush.msra.mxu0 %v120
      %190 = vmatpush.msra.mxu0 %v117
      %191 = vmatpush.msra.mxu0 %v114
      %192 = vmatpush.msra.mxu0 %v111
      %193 = vmatpush.msra.mxu0 %v108
      %194 = vmatpush.msra.mxu0 %v105
      %195 = vmatpush.msra.mxu0 %v102
      %196 = vmatpush.msra.mxu0 %v99
      %197 = vmatpush.msra.mxu0 %v96
      %198 = vmatmul.f32.gmra.mxu0 %v93
      %v199 = vpop.f32.mrf.mxu0
      %v200 = vadd.f32 0.0, %v199
      %201 = vdwg.mxu0
      %v202 = vld [vmem:[%s4] sm:$0x1]
      %v204 = vperm.slane %v202, 0
      %v206 = vadd.f32 %v160, %v204
      %v207 = vtanh.pop %v206
      %v208 = vld [vmem:[#allocation7] sm:$0xff]
      %v209 = vld [vmem:[#allocation7 + $0x8] sm:$0xff]
      %v210 = vld [vmem:[#allocation7 + $0x10] sm:$0xff]
      %v211 = vld [vmem:[#allocation7 + $0x18] sm:$0xff]
      %v212 = vld [vmem:[#allocation7 + $0x20] sm:$0xff]
      %v213 = vld [vmem:[#allocation7 + $0x28] sm:$0xff]
      %v214 = vld [vmem:[#allocation7 + $0x30] sm:$0xff]
      %v215 = vld [vmem:[#allocation7 + $0x38] sm:$0xff]
      %v216 = vld [vmem:[#allocation7 + $0x40] sm:$0xff]
      %v217 = vld [vmem:[#allocation7 + $0x48] sm:$0xff]
      %v218 = vld [vmem:[#allocation7 + $0x50] sm:$0xff]
      %v219 = vld [vmem:[#allocation7 + $0x58] sm:$0xff]
      %v220 = vld [vmem:[#allocation7 + $0x60] sm:$0xff]
      %v221 = vld [vmem:[#allocation7 + $0x68] sm:$0xff]
      %v222 = vld [vmem:[#allocation7 + $0x70] sm:$0xff]
      %v223 = vld [vmem:[#allocation7 + $0x78] sm:$0xff]
      %v224 = vld [vmem:[#allocation8] sm:$0x1]
      %v225 = vperm.slane %v224, 0
      %226 = vmatpush.msra.mxu0 %v223
      %227 = vmatpush.msra.mxu0 %v222
      %228 = vmatpush.msra.mxu0 %v221
      %229 = vmatpush.msra.mxu0 %v220
      %230 = vmatpush.msra.mxu0 %v219
      %231 = vmatpush.msra.mxu0 %v218
      %232 = vmatpush.msra.mxu0 %v217
      %233 = vmatpush.msra.mxu0 %v216
      %234 = vmatpush.msra.mxu0 %v215
      %235 = vmatpush.msra.mxu0 %v214
      %236 = vmatpush.msra.mxu0 %v213
      %237 = vmatpush.msra.mxu0 %v212
      %238 = vmatpush.msra.mxu0 %v211
      %239 = vmatpush.msra.mxu0 %v210
      %240 = vmatpush.msra.mxu0 %v209
      %241 = vmatpush.msra.mxu0 %v208
      %242 = vmatmul.f32.gmra.mxu0 %v207
      %v243 = vpop.f32.mrf.mxu0
      %v244 = vadd.f32 %v225, %v243
      %245 = vdwg.mxu0
      %246 = vst [vmem:[%s7] sm:$0xff] %v244
      %v247 = vld [vmem:[%s4 + $0x1] sm:$0x3]
      %v249 = vperm.slane %v247, 0
      %v250 = vperm.slane %v247, 1
      %v253 = vadd.f32 %v180, %v249
      %v254 = vadd.f32 %v200, %v250
      %v257 = vrot.slane %v254, 7
      %vm258 = vcmask 1040384
      %v259 = vsel %vm258, %v253, %v257
      %v261 = vlaneseq
      %vm262 = vcmp.ge.s32.totalorder %v261, 0
      %vm263 = vcmp.lt.s32.totalorder %v261, 256
      %vm264 = vmand %vm262, %vm263
      %265 = vst.msk [vmem:[#allocation2] sm:$0x3] %vm264, %v259
    $region49: #{run_heads.1} parent=1 // pred_fallthru
      _
    %v266 = vld [vmem:[%s1] sm:$0xff]
    %v267 = vld [vmem:[#allocation5] sm:$0xff]
    %v268 = vld [vmem:[#allocation5 + $0x8] sm:$0xff]
    %v269 = vld [vmem:[#allocation5 + $0x10] sm:$0xff]
    %v270 = vld [vmem:[#allocation5 + $0x18] sm:$0xff]
    %v271 = vld [vmem:[#allocation5 + $0x20] sm:$0xff]
    %v272 = vld [vmem:[#allocation5 + $0x28] sm:$0xff]
    %v273 = vld [vmem:[#allocation5 + $0x30] sm:$0xff]
    %v274 = vld [vmem:[#allocation5 + $0x38] sm:$0xff]
    %v275 = vld [vmem:[#allocation5 + $0x40] sm:$0xff]
    %v276 = vld [vmem:[#allocation5 + $0x48] sm:$0xff]
    %v277 = vld [vmem:[#allocation5 + $0x50] sm:$0xff]
    %v278 = vld [vmem:[#allocation5 + $0x58] sm:$0xff]
    %v279 = vld [vmem:[#allocation5 + $0x60] sm:$0xff]
    %v280 = vld [vmem:[#allocation5 + $0x68] sm:$0xff]
    %v281 = vld [vmem:[#allocation5 + $0x70] sm:$0xff]
    %v282 = vld [vmem:[#allocation5 + $0x78] sm:$0xff]
    %v283 = vld [vmem:[#allocation5 + $0x80] sm:$0xff]
    %v284 = vld [vmem:[#allocation5 + $0x88] sm:$0xff]
    %v285 = vld [vmem:[#allocation5 + $0x90] sm:$0xff]
    %v286 = vld [vmem:[#allocation5 + $0x98] sm:$0xff]
    %v287 = vld [vmem:[#allocation5 + $0xa0] sm:$0xff]
    %v288 = vld [vmem:[#allocation5 + $0xa8] sm:$0xff]
    %v289 = vld [vmem:[#allocation5 + $0xb0] sm:$0xff]
    %v290 = vld [vmem:[#allocation5 + $0xb8] sm:$0xff]
    %v291 = vld [vmem:[#allocation5 + $0xc0] sm:$0xff]
    %v292 = vld [vmem:[#allocation5 + $0xc8] sm:$0xff]
    %v293 = vld [vmem:[#allocation5 + $0xd0] sm:$0xff]
    %v294 = vld [vmem:[#allocation5 + $0xd8] sm:$0xff]
    %v295 = vld [vmem:[#allocation5 + $0xe0] sm:$0xff]
    %v296 = vld [vmem:[#allocation5 + $0xe8] sm:$0xff]
    %v297 = vld [vmem:[#allocation5 + $0xf0] sm:$0xff]
    %v298 = vld [vmem:[#allocation5 + $0xf8] sm:$0xff]
    %v299 = vld [vmem:[#allocation2] sm:$0x3]
    %v301 = vperm.slane %v299, 0
    %v302 = vperm.slane %v299, 1
    %305 = vmatpush.msra.mxu0 %v297
    %306 = vmatpush.msra.mxu0 %v295
    %307 = vmatpush.msra.mxu0 %v293
    %308 = vmatpush.msra.mxu0 %v291
    %309 = vmatpush.msra.mxu0 %v289
    %310 = vmatpush.msra.mxu0 %v287
    %311 = vmatpush.msra.mxu0 %v285
    %312 = vmatpush.msra.mxu0 %v283
    %313 = vmatpush.msra.mxu0 %v281
    %314 = vmatpush.msra.mxu0 %v279
    %315 = vmatpush.msra.mxu0 %v277
    %316 = vmatpush.msra.mxu0 %v275
    %317 = vmatpush.msra.mxu0 %v273
    %318 = vmatpush.msra.mxu0 %v271
    %319 = vmatpush.msra.mxu0 %v269
    %320 = vmatpush.msra.mxu0 %v267
    %321 = vmatmul.f32.gmra.mxu0 %v266
    %v322 = vpop.f32.mrf.mxu0
    %v323 = vadd.f32 %v301, %v322
    %324 = vdwg.mxu0
    %325 = vmatpush.msra.mxu0 %v298
    %326 = vmatpush.msra.mxu0 %v296
    %327 = vmatpush.msra.mxu0 %v294
    %328 = vmatpush.msra.mxu0 %v292
    %329 = vmatpush.msra.mxu0 %v290
    %330 = vmatpush.msra.mxu0 %v288
    %331 = vmatpush.msra.mxu0 %v286
    %332 = vmatpush.msra.mxu0 %v284
    %333 = vmatpush.msra.mxu0 %v282
    %334 = vmatpush.msra.mxu0 %v280
    %335 = vmatpush.msra.mxu0 %v278
    %336 = vmatpush.msra.mxu0 %v276
    %337 = vmatpush.msra.mxu0 %v274
    %338 = vmatpush.msra.mxu0 %v272
    %339 = vmatpush.msra.mxu0 %v270
    %340 = vmatpush.msra.mxu0 %v268
    %341 = vmatmul.f32.gmra.mxu0 %v266
    %v342 = vpop.f32.mrf.mxu0
    %v343 = vadd.f32 %v302, %v342
    %344 = vdwg.mxu0
    %v345 = vtanh.pop %v323
    %v346 = vtanh.pop %v343
    %v347 = vld [vmem:[#allocation7 + $0x80] sm:$0xff]
    %v348 = vld [vmem:[#allocation7 + $0x88] sm:$0xff]
    %v349 = vld [vmem:[#allocation7 + $0x90] sm:$0xff]
    %v350 = vld [vmem:[#allocation7 + $0x98] sm:$0xff]
    %v351 = vld [vmem:[#allocation7 + $0xa0] sm:$0xff]
    %v352 = vld [vmem:[#allocation7 + $0xa8] sm:$0xff]
    %v353 = vld [vmem:[#allocation7 + $0xb0] sm:$0xff]
    %v354 = vld [vmem:[#allocation7 + $0xb8] sm:$0xff]
    %v355 = vld [vmem:[#allocation7 + $0xc0] sm:$0xff]
    %v356 = vld [vmem:[#allocation7 + $0xc8] sm:$0xff]
    %v357 = vld [vmem:[#allocation7 + $0xd0] sm:$0xff]
    %v358 = vld [vmem:[#allocation7 + $0xd8] sm:$0xff]
    %v359 = vld [vmem:[#allocation7 + $0xe0] sm:$0xff]
    %v360 = vld [vmem:[#allocation7 + $0xe8] sm:$0xff]
    %v361 = vld [vmem:[#allocation7 + $0xf0] sm:$0xff]
    %v362 = vld [vmem:[#allocation7 + $0xf8] sm:$0xff]
    %v363 = vld [vmem:[#allocation7 + $0x100] sm:$0xff]
    %v364 = vld [vmem:[#allocation7 + $0x108] sm:$0xff]
    %v365 = vld [vmem:[#allocation7 + $0x110] sm:$0xff]
    %v366 = vld [vmem:[#allocation7 + $0x118] sm:$0xff]
    %v367 = vld [vmem:[#allocation7 + $0x120] sm:$0xff]
    %v368 = vld [vmem:[#allocation7 + $0x128] sm:$0xff]
    %v369 = vld [vmem:[#allocation7 + $0x130] sm:$0xff]
    %v370 = vld [vmem:[#allocation7 + $0x138] sm:$0xff]
    %v371 = vld [vmem:[#allocation7 + $0x140] sm:$0xff]
    %v372 = vld [vmem:[#allocation7 + $0x148] sm:$0xff]
    %v373 = vld [vmem:[#allocation7 + $0x150] sm:$0xff]
    %v374 = vld [vmem:[#allocation7 + $0x158] sm:$0xff]
    %v375 = vld [vmem:[#allocation7 + $0x160] sm:$0xff]
    %v376 = vld [vmem:[#allocation7 + $0x168] sm:$0xff]
    %v377 = vld [vmem:[#allocation7 + $0x170] sm:$0xff]
    %v378 = vld [vmem:[#allocation7 + $0x178] sm:$0xff]
    %v379 = vld [vmem:[#allocation8 + $0x1] sm:$0x1]
    %v380 = vperm.slane %v379, 0
    %381 = vmatpush.msra.mxu0 %v362
    %382 = vmatpush.msra.mxu0 %v361
    %383 = vmatpush.msra.mxu0 %v360
    %384 = vmatpush.msra.mxu0 %v359
    %385 = vmatpush.msra.mxu0 %v358
    %386 = vmatpush.msra.mxu0 %v357
    %387 = vmatpush.msra.mxu0 %v356
    %388 = vmatpush.msra.mxu0 %v355
    %389 = vmatpush.msra.mxu0 %v354
    %390 = vmatpush.msra.mxu0 %v353
    %391 = vmatpush.msra.mxu0 %v352
    %392 = vmatpush.msra.mxu0 %v351
    %393 = vmatpush.msra.mxu0 %v350
    %394 = vmatpush.msra.mxu0 %v349
    %395 = vmatpush.msra.mxu0 %v348
    %396 = vmatpush.msra.mxu0 %v347
    %397 = vmatmul.f32.gmra.mxu0 %v345
    %v398 = vpop.f32.mrf.mxu0
    %v399 = vadd.f32 %v380, %v398
    %400 = vdwg.mxu0
    %401 = vmatpush.msra.mxu0 %v378
    %402 = vmatpush.msra.mxu0 %v377
    %403 = vmatpush.msra.mxu0 %v376
    %404 = vmatpush.msra.mxu0 %v375
    %405 = vmatpush.msra.mxu0 %v374
    %406 = vmatpush.msra.mxu0 %v373
    %407 = vmatpush.msra.mxu0 %v372
    %408 = vmatpush.msra.mxu0 %v371
    %409 = vmatpush.msra.mxu0 %v370
    %410 = vmatpush.msra.mxu0 %v369
    %411 = vmatpush.msra.mxu0 %v368
    %412 = vmatpush.msra.mxu0 %v367
    %413 = vmatpush.msra.mxu0 %v366
    %414 = vmatpush.msra.mxu0 %v365
    %415 = vmatpush.msra.mxu0 %v364
    %416 = vmatpush.msra.mxu0 %v363
    %417 = vmatmul.f32.gmra.mxu0 %v346
    %v418 = vpop.f32.mrf.mxu0
    %v419 = vadd.f32 %v399, %v418
    %420 = vdwg.mxu0
    %421 = vst [vmem:[%s8] sm:$0xff] %v419
    // Predicated region
    $region50: #{run_heads.1} parent=1 // pred_check
      _
    $region51: #{run_heads.1} parent=1 // pred_check_branch
      %423 = sbr.rel (0) target = $region53
    $region52: #{run_heads.1} parent=1 // pred_region
      _
    $region53: #{run_heads.1} parent=1 // pred_fallthru
      _
    // Predicated region
    $region54: #{run_heads.1} parent=1 // pred_check
      _
    $region55: #{run_heads.1} parent=1 // pred_check_branch
      %425 = sbr.rel (0) target = $region57
    $region56: #{run_heads.1} parent=1 // pred_region
      _
    $region57: #{run_heads.1} parent=1 // pred_fallthru
      _
    // Predicated region
    $region58: #{run_heads.1} parent=1 // pred_check
      _
    $region59: #{run_heads.1} parent=1 // pred_check_branch
      %427 = sbr.rel (0) target = $region61
    $region60: #{run_heads.1} parent=1 // pred_region
      _
    $region61: #{run_heads.1} parent=1 // pred_fallthru
      _
    // Predicated region
    $region62: #{run_heads.1} parent=1 // pred_check
      _
    $region63: #{run_heads.1} parent=1 // pred_check_branch
      %429 = sbr.rel (0) target = $region65
    $region64: #{run_heads.1} parent=1 // pred_region
      _
    $region65: #{run_heads.1} parent=1 // pred_fallthru
      _
    %430 = vsyncpa [#allocation4], 1
    %431 = vsyncpa [#allocation6], 1
    %432 = vsyncpa [#allocation9], 1

</llo_original>
